<compile_context>
chip_gen: v7x
topology: tpu7x:2x2x1
jax: 0.10.0
libtpu: 0.0.40
codegen_flags: <defaults>
</compile_context>

<pallas_src>
import functools

import jax
import jax.numpy as jnp
from jax.experimental import pallas as pl
from jax.experimental.pallas import tpu as pltpu

_MIB = 1024 * 1024
_SUBLANE = 8
_LANE = 128

# Targets from the performance review: ~1-4 MiB padded blocks, >= ~8 grid steps.
_TARGET_BLOCK = 2 * _MIB
_MAX_BLOCK = 4 * _MIB
_MIN_STEPS = 8


# ---------------------------------------------------------------------------
# Tiling / compiler-parameter helpers
# ---------------------------------------------------------------------------
def _round_up(x, m):
    return -(-x // m) * m


def _cdiv(a, b):
    return -(-a // b)


def _vmem_capacity_bytes():
    """Physical VMEM per TensorCore; conservative 64 MiB (v7x) fallback."""
    cap = 64 * _MIB
    try:
        info = pltpu.get_tpu_info()
        cap = int(getattr(info, "vmem_capacity_bytes", cap)) or cap
    except Exception:
        pass
    return cap


def _padded_block_bytes(tb, tt, C):
    # f32 working set; Mosaic pads the trailing two dims onto (8, 128) tiles.
    return tb * _round_up(max(tt, 1), _SUBLANE) * _round_up(C, _LANE) * 4


def _default_tiles(B, T, C):
    """Pick (tb, tt): padded blocks around 1-4 MiB, grid >= ~8 steps when the
    shape allows, batch-step count nudged even (helps v7x core balance)."""
    one_full = _padded_block_bytes(1, T, C)

    if one_full <= _MAX_BLOCK:
        tt = T                                     # whole sequence per block
    else:
        # T-tiled: a ~2 MiB chunk per batch row, tt a multiple of 8; prefer a
        # divisor of T in [tt/2, tt] so the stats kernel can skip masking.
        row8 = _padded_block_bytes(1, _SUBLANE, C)
        rows = max(1, _TARGET_BLOCK // row8)
        tt8 = max(_SUBLANE, min(rows * _SUBLANE, (T // _SUBLANE) * _SUBLANE))
        tt = tt8
        cand = tt8
        while cand >= max(_SUBLANE, tt8 // 2):
            if T % cand == 0:
                tt = cand
                break
            cand -= _SUBLANE

    chunk = _padded_block_bytes(1, tt, C)
    tb = max(1, min(B, _MAX_BLOCK // max(chunk, 1)))

    # Keep the total step count >= _MIN_STEPS when the shape allows it.
    n_t = _cdiv(T, tt)
    need_b = _cdiv(_MIN_STEPS, n_t)
    if B >= need_b:
        tb = min(tb, max(1, B // need_b))

    # Prefer an even number of batch steps (v7x: 2 TCs share the parallel axis).
    nb = _cdiv(B, tb)
    if nb > 1 and nb % 2 == 1:
        tb_alt = max(1, _cdiv(B, nb + 1))
        if _cdiv(B, tb_alt) % 2 == 0:
            tb = tb_alt

    return int(tb), int(tt)


def _compiler_params(dim_semantics, block_bytes):
    cap = _vmem_capacity_bytes()
    # Size the scoped-VMEM limit to the footprint (buffered in/out blocks plus
    # f32 temporaries) + headroom; keep it explicit so v5e's 16 MiB scoped
    # default never silently forces tiny blocks.
    limit = 8 * block_bytes + 8 * _MIB
    limit = max(16 * _MIB, min(limit, cap - 16 * _MIB))
    return pltpu.CompilerParams(
        dimension_semantics=tuple(dim_semantics),
        vmem_limit_bytes=int(limit),
    )


def _block_spec(shape, index_map, buffers=None):
    """BlockSpec, optionally requesting a deeper input pipeline (Buffered(n))."""
    if buffers is not None and hasattr(pl, "Buffered"):
        try:
            return pl.BlockSpec(shape, index_map, pipeline_mode=pl.Buffered(buffers))
        except TypeError:
            pass
    return pl.BlockSpec(shape, index_map)


# ---------------------------------------------------------------------------
# Kernels
# ---------------------------------------------------------------------------
def _norm_single_kernel(x_ref, y_ref, stats_ref, *, eps):
    """Single-pass norm: block covers the full sequence, (tb, T, C)."""
    x = x_ref[...].astype(jnp.float32)
    mean = jnp.mean(x, axis=1, keepdims=True)                     # (tb, 1, C)
    var = jnp.mean(jnp.square(x - mean), axis=1, keepdims=True)   # biased var
    stdev = jnp.sqrt(var + eps)
    inv = 1.0 / stdev                                # exact divide on tiny vec
    # (x - mean) recomputed instead of hoisted: VPU slack, saves a VMEM temp.
    y_ref[...] = ((x - mean) * inv).astype(y_ref.dtype)
    stats_ref[:, 0:1, :] = mean.astype(stats_ref.dtype)
    stats_ref[:, 1:2, :] = stdev.astype(stats_ref.dtype)


def _norm_stats_kernel(x_ref, stats_ref, sum_ref, sq_ref, *, eps, seq_len, block_t):
    """Pass 1 of the T-tiled path: accumulate sum / sum-of-squares over T."""
    t = pl.program_id(1)

    @pl.when(t == 0)
    def _():
        sum_ref[...] = jnp.zeros_like(sum_ref)
        sq_ref[...] = jnp.zeros_like(sq_ref)

    x = x_ref[...].astype(jnp.float32)                            # (tb, tt, C)
    if seq_len % block_t != 0:
        # Mask the trailing partial T block (garbage beyond seq_len).
        t0 = t * block_t
        ids = jax.lax.broadcasted_iota(jnp.int32, x.shape, 1)
        x = jnp.where(ids + t0 < seq_len, x, 0.0)
    sum_ref[...] += jnp.sum(x, axis=1, keepdims=True)
    sq_ref[...] += jnp.sum(x * x, axis=1, keepdims=True)

    @pl.when(t == pl.num_programs(1) - 1)
    def _():
        inv_n = 1.0 / seq_len
        mean = sum_ref[...] * inv_n
        var = jnp.maximum(sq_ref[...] * inv_n - mean * mean, 0.0)
        stdev = jnp.sqrt(var + eps)
        stats_ref[:, 0:1, :] = mean.astype(stats_ref.dtype)
        stats_ref[:, 1:2, :] = stdev.astype(stats_ref.dtype)


def _norm_apply_kernel(x_ref, stats_ref, y_ref):
    """Pass 2 of the T-tiled path: y = (x - mean) / stdev."""
    x = x_ref[...].astype(jnp.float32)
    mean = stats_ref[:, 0:1, :].astype(jnp.float32)
    inv = 1.0 / stats_ref[:, 1:2, :].astype(jnp.float32)
    y_ref[...] = ((x - mean) * inv).astype(y_ref.dtype)


def _denorm_kernel(x_ref, mean_ref, std_ref, y_ref):
    x = x_ref[...].astype(jnp.float32)
    y = x * std_ref[...].astype(jnp.float32) + mean_ref[...].astype(jnp.float32)
    y_ref[...] = y.astype(y_ref.dtype)


def _denorm_mean_kernel(x_ref, mean_ref, y_ref):
    x = x_ref[...].astype(jnp.float32)
    y_ref[...] = (x + mean_ref[...].astype(jnp.float32)).astype(y_ref.dtype)


# ---------------------------------------------------------------------------
# Wrappers
# ---------------------------------------------------------------------------
def revin_norm(x, eps=1e-5, *, donate_x=False, block_b=None, block_t=None):
    """Returns (y, mean, stdev); mean/stdev are float32 with shape (B, 1, C)."""
    B, T, C = x.shape
    tb_d, tt_d = _default_tiles(B, T, C)
    tb = int(block_b) if block_b is not None else tb_d
    tt = min(int(block_t), T) if block_t is not None else tt_d
    itemsize = jnp.dtype(x.dtype).itemsize
    nb = pl.cdiv(B, tb)
    alias = {0: 0} if donate_x else {}

    if tt >= T:
        # --- single-pass: whole sequence per block --------------------------
        x_spec = pl.BlockSpec((tb, T, C), lambda b: (b, 0, 0))
        stats_spec = pl.BlockSpec((tb, 2, C), lambda b: (b, 0, 0))
        blk = _padded_block_bytes(tb, T, C)
        y, stats = pl.pallas_call(
            functools.partial(_norm_single_kernel, eps=eps),
            out_shape=(jax.ShapeDtypeStruct((B, T, C), x.dtype),
                       jax.ShapeDtypeStruct((B, 2, C), jnp.float32)),
            grid=(nb,),
            in_specs=[x_spec],
            out_specs=(x_spec, stats_spec),
            compiler_params=_compiler_params(("parallel",), blk),
            cost_estimate=pl.CostEstimate(
                flops=6 * B * T * C,
                transcendentals=B * C,
                bytes_accessed=2 * B * T * C * itemsize + 2 * B * C * 4),
            input_output_aliases=alias,
        )(x)
    else:
        # --- two-pass: T-tiled stats reduction, then normalize --------------
        nt = pl.cdiv(T, tt)
        x_spec = pl.BlockSpec((tb, tt, C), lambda b, t: (b, t, 0))
        stats_spec = pl.BlockSpec((tb, 2, C), lambda b, t: (b, 0, 0))
        blk = _padded_block_bytes(tb, tt, C)
        stats = pl.pallas_call(
            functools.partial(_norm_stats_kernel, eps=eps, seq_len=T, block_t=tt),
            out_shape=jax.ShapeDtypeStruct((B, 2, C), jnp.float32),
            grid=(nb, nt),
            in_specs=[x_spec],
            out_specs=stats_spec,
            scratch_shapes=[pltpu.VMEM((tb, 1, C), jnp.float32),
                            pltpu.VMEM((tb, 1, C), jnp.float32)],
            compiler_params=_compiler_params(("parallel", "arbitrary"), blk),
            cost_estimate=pl.CostEstimate(
                flops=3 * B * T * C, transcendentals=B * C,
                bytes_accessed=B * T * C * itemsize + 2 * B * C * 4),
        )(x)
        y = pl.pallas_call(
            _norm_apply_kernel,
            out_shape=jax.ShapeDtypeStruct((B, T, C), x.dtype),
            grid=(nb, nt),
            in_specs=[_block_spec((tb, tt, C), lambda b, t: (b, t, 0), buffers=3),
                      stats_spec],
            out_specs=x_spec,
            compiler_params=_compiler_params(("parallel", "parallel"), blk),
            cost_estimate=pl.CostEstimate(
                flops=2 * B * T * C, transcendentals=0,
                bytes_accessed=2 * B * T * C * itemsize + 2 * B * C * 4),
            input_output_aliases=alias,
        )(x, stats)

    mean = stats[:, 0:1, :]
    stdev = stats[:, 1:2, :]
    return y, mean, stdev


def revin_denorm(x, mean, stdev, *, donate_x=False, block_b=None, block_t=None):
    B, T, C = x.shape
    tb_d, tt_d = _default_tiles(B, T, C)
    tb = int(block_b) if block_b is not None else tb_d
    tt = min(int(block_t), T) if block_t is not None else tt_d
    itemsize = jnp.dtype(x.dtype).itemsize
    nb, nt = pl.cdiv(B, tb), pl.cdiv(T, tt)
    data_spec = pl.BlockSpec((tb, tt, C), lambda b, t: (b, t, 0))
    stat_spec = pl.BlockSpec((tb, 1, C), lambda b, t: (b, 0, 0))
    blk = _padded_block_bytes(tb, tt, C)
    return pl.pallas_call(
        _denorm_kernel,
        out_shape=jax.ShapeDtypeStruct((B, T, C), x.dtype),
        grid=(nb, nt),
        in_specs=[_block_spec((tb, tt, C), lambda b, t: (b, t, 0), buffers=3),
                  stat_spec, stat_spec],
        out_specs=data_spec,
        compiler_params=_compiler_params(("parallel", "parallel"), blk),
        cost_estimate=pl.CostEstimate(
            flops=2 * B * T * C, transcendentals=0,
            bytes_accessed=2 * B * T * C * itemsize + 2 * B * C * 4),
        input_output_aliases=({0: 0} if donate_x else {}),
    )(x, mean.astype(jnp.float32), stdev.astype(jnp.float32))


def revin_denorm_mean(x, mean, *, donate_x=False, block_b=None, block_t=None):
    B, T, C = x.shape
    tb_d, tt_d = _default_tiles(B, T, C)
    tb = int(block_b) if block_b is not None else tb_d
    tt = min(int(block_t), T) if block_t is not None else tt_d
    itemsize = jnp.dtype(x.dtype).itemsize
    nb, nt = pl.cdiv(B, tb), pl.cdiv(T, tt)
    data_spec = pl.BlockSpec((tb, tt, C), lambda b, t: (b, t, 0))
    stat_spec = pl.BlockSpec((tb, 1, C), lambda b, t: (b, 0, 0))
    blk = _padded_block_bytes(tb, tt, C)
    return pl.pallas_call(
        _denorm_mean_kernel,
        out_shape=jax.ShapeDtypeStruct((B, T, C), x.dtype),
        grid=(nb, nt),
        in_specs=[_block_spec((tb, tt, C), lambda b, t: (b, t, 0), buffers=3),
                  stat_spec],
        out_specs=data_spec,
        compiler_params=_compiler_params(("parallel", "parallel"), blk),
        cost_estimate=pl.CostEstimate(
            flops=B * T * C, transcendentals=0,
            bytes_accessed=2 * B * T * C * itemsize + B * C * 4),
        input_output_aliases=({0: 0} if donate_x else {}),
    )(x, mean.astype(jnp.float32))


class RevIN:
    """JAX/Pallas port of the PyTorch RevIN module (no affine parameters)."""

    def __init__(self, eps=1e-5):
        self.num_features = 1  # matches the torch module (unused, no affine)
        self.eps = eps
        self.mean = None
        self.stdev = None

    def __call__(self, x, mode: str):
        if mode == "norm":
            y, self.mean, self.stdev = revin_norm(x, self.eps)
            return y
        elif mode == "denorm":
            return revin_denorm(x, self.mean, self.stdev)
        else:  # 'denorm_mean' path in the original module
            return revin_denorm_mean(x, self.mean)


# ---------------------------------------------------------------------------
# Demo / correctness check
# ---------------------------------------------------------------------------
if __name__ == "__main__":
    key = jax.random.PRNGKey(0)
    k0, k1 = jax.random.split(key)

    def ref_stats(x, eps=1e-5):
        mean = jnp.mean(x, axis=1, keepdims=True)
        var = jnp.mean((x - mean) ** 2, axis=1, keepdims=True)  # unbiased=False
        return mean, jnp.sqrt(var + eps)

    # ---- default tiling (single-pass norm path) ---------------------------
    B, T, C = 4, 16, 8
    x = jax.random.normal(k0, (B, T, C), dtype=jnp.float32) * 3.0 + 1.5

    revin = RevIN(eps=1e-5)
    y = revin(x, "norm")
    jax.block_until_ready(y)

    mean_ref, std_ref = ref_stats(x)
    y_ref = (x - mean_ref) / std_ref
    assert jnp.allclose(y, y_ref, atol=1e-5, rtol=1e-5)
    assert jnp.allclose(revin.mean, mean_ref, atol=1e-5, rtol=1e-5)
    assert jnp.allclose(revin.stdev, std_ref, atol=1e-5, rtol=1e-5)

    x_back = revin(y, "denorm")
    jax.block_until_ready(x_back)
    assert jnp.allclose(x_back, x, atol=1e-4, rtol=1e-4)

    z = revin(y, "denorm_mean")
    jax.block_until_ready(z)
    assert jnp.allclose(z, y_ref + mean_ref, atol=1e-5, rtol=1e-5)

    # ---- odd shapes, forced T-tiled two-pass path (partial blocks + mask) --
    B2, T2, C2 = 3, 20, 5
    x2 = jax.random.normal(k1, (B2, T2, C2), dtype=jnp.float32) * 0.5 + 0.3

    y2, m2, s2 = revin_norm(x2, 1e-5, block_b=2, block_t=8)
    jax.block_until_ready(y2)
    m2_ref, s2_ref = ref_stats(x2)
    y2_ref = (x2 - m2_ref) / s2_ref
    assert jnp.allclose(y2, y2_ref, atol=1e-4, rtol=1e-4)
    assert jnp.allclose(m2, m2_ref, atol=1e-4, rtol=1e-4)
    assert jnp.allclose(s2, s2_ref, atol=1e-4, rtol=1e-4)

    x2_back = revin_denorm(y2, m2, s2, block_b=2, block_t=8)
    jax.block_until_ready(x2_back)
    assert jnp.allclose(x2_back, x2, atol=1e-4, rtol=1e-4)

    z2 = revin_denorm_mean(y2, m2, block_b=2, block_t=8)
    jax.block_until_ready(z2)
    assert jnp.allclose(z2, y2_ref + m2_ref, atol=1e-4, rtol=1e-4)

    print("KERNEL_OK")
</pallas_src>

<mosaic_0001>
module attributes {stable_mosaic.version = 11 : i64} {
  func.func @_norm_single_kernel(%arg0: i32, %arg1: memref<4x16x8xf32, #tpu.memory_space<vmem>>, %arg2: memref<4x16x8xf32, #tpu.memory_space<vmem>>, %arg3: memref<4x2x8xf32, #tpu.memory_space<vmem>>) attributes {dimension_semantics = [#tpu.dimension_semantics<parallel>], iteration_bounds = array<i64: 1>, scalar_prefetch = 0 : i64, scratch_operands = 0 : i64, tpu.core_type = #tpu.core_type<tc>, window_params = [{transform_indices = @transform_0, window_bounds = array<i64: 4, 16, 8>}, {transform_indices = @transform_1, window_bounds = array<i64: 4, 16, 8>}, {transform_indices = @transform_2, window_bounds = array<i64: 4, 2, 8>}]} {
    %c0 = arith.constant 0 : index
    %c0_0 = arith.constant 0 : index
    %c0_1 = arith.constant 0 : index
    %0 = vector.load %arg1[%c0, %c0_0, %c0_1] : memref<4x16x8xf32, #tpu.memory_space<vmem>>, vector<4x16x8xf32>
    %cst = arith.constant dense<0.000000e+00> : vector<4x8xf32>
    %1 = vector.multi_reduction <add>, %0, %cst [1] : vector<4x16x8xf32> to vector<4x8xf32>
    %2 = vector.shape_cast %1 : vector<4x8xf32> to vector<4x1x8xf32>
    %cst_2 = arith.constant 1.600000e+01 : f32
    %3 = vector.broadcast %cst_2 : f32 to vector<4x1x8xf32>
    %4 = arith.divf %2, %3 : vector<4x1x8xf32>
    %5 = vector.broadcast %4 : vector<4x1x8xf32> to vector<4x16x8xf32>
    %6 = arith.subf %0, %5 : vector<4x16x8xf32>
    %7 = arith.mulf %6, %6 : vector<4x16x8xf32>
    %cst_3 = arith.constant dense<0.000000e+00> : vector<4x8xf32>
    %8 = vector.multi_reduction <add>, %7, %cst_3 [1] : vector<4x16x8xf32> to vector<4x8xf32>
    %9 = vector.shape_cast %8 : vector<4x8xf32> to vector<4x1x8xf32>
    %cst_4 = arith.constant 1.600000e+01 : f32
    %10 = vector.broadcast %cst_4 : f32 to vector<4x1x8xf32>
    %11 = arith.divf %9, %10 : vector<4x1x8xf32>
    %cst_5 = arith.constant 9.99999974E-6 : f32
    %12 = vector.broadcast %cst_5 : f32 to vector<4x1x8xf32>
    %13 = arith.addf %11, %12 : vector<4x1x8xf32>
    %14 = math.sqrt %13 : vector<4x1x8xf32>
    %cst_6 = arith.constant 1.000000e+00 : f32
    %15 = vector.broadcast %cst_6 : f32 to vector<4x1x8xf32>
    %16 = arith.divf %15, %14 : vector<4x1x8xf32>
    %17 = vector.broadcast %4 : vector<4x1x8xf32> to vector<4x16x8xf32>
    %18 = arith.subf %0, %17 : vector<4x16x8xf32>
    %19 = vector.broadcast %16 : vector<4x1x8xf32> to vector<4x16x8xf32>
    %20 = arith.mulf %18, %19 : vector<4x16x8xf32>
    %c0_7 = arith.constant 0 : index
    %c0_8 = arith.constant 0 : index
    %c0_9 = arith.constant 0 : index
    %21 = vector.load %arg2[%c0_7, %c0_8, %c0_9] : memref<4x16x8xf32, #tpu.memory_space<vmem>>, vector<4x16x8xf32>
    tpu.vector_store %arg2[%c0_7, %c0_8, %c0_9], %20 {strides = array<i32>} : memref<4x16x8xf32, #tpu.memory_space<vmem>>, vector<4x16x8xf32>,
    %c0_10 = arith.constant 0 : index
    %c0_11 = arith.constant 0 : index
    %c0_12 = arith.constant 0 : index
    %22 = vector.load %arg3[%c0_10, %c0_11, %c0_12] : memref<4x2x8xf32, #tpu.memory_space<vmem>>, vector<4x1x8xf32>
    tpu.vector_store %arg3[%c0_10, %c0_11, %c0_12], %4 {strides = array<i32>} : memref<4x2x8xf32, #tpu.memory_space<vmem>>, vector<4x1x8xf32>,
    %c0_13 = arith.constant 0 : index
    %c1 = arith.constant 1 : index
    %c0_14 = arith.constant 0 : index
    %23 = vector.load %arg3[%c0_13, %c1, %c0_14] : memref<4x2x8xf32, #tpu.memory_space<vmem>>, vector<4x1x8xf32>
    tpu.vector_store %arg3[%c0_13, %c1, %c0_14], %14 {strides = array<i32>} : memref<4x2x8xf32, #tpu.memory_space<vmem>>, vector<4x1x8xf32>,
    return
  }
  func.func @transform_0(%arg0: i32) -> (i32, i32, i32) {
    %c0_i32 = arith.constant 0 : i32
    %c0_i32_0 = arith.constant 0 : i32
    %c0_i32_1 = arith.constant 0 : i32
    return %arg0, %c0_i32, %c0_i32_0 : i32, i32, i32
  }
  func.func @transform_1(%arg0: i32) -> (i32, i32, i32) {
    %c0_i32 = arith.constant 0 : i32
    %c0_i32_0 = arith.constant 0 : i32
    %c0_i32_1 = arith.constant 0 : i32
    return %arg0, %c0_i32, %c0_i32_0 : i32, i32, i32
  }
  func.func @transform_2(%arg0: i32) -> (i32, i32, i32) {
    %c0_i32 = arith.constant 0 : i32
    %c0_i32_0 = arith.constant 0 : i32
    %c0_i32_1 = arith.constant 0 : i32
    return %arg0, %c0_i32, %c0_i32_0 : i32, i32, i32
  }
}

</mosaic_0001>

<llo_original>
// kernel: tpu_custom_call.1
$region0: #{tpu_custom_call.1}
  #allocation0 [shape = 'u32[]', space=smem, size = 0x4, offset = 0x4, fixed_abs, tag = 'smem constant byte address 0x4 - core index']
  #allocation1 [shape = 'u32[144,128]{1,0:T(1,128)}', space=vmem, size = 0x12000, scoped, tag = 'internal scratch']
  %s0 = inlined_call_operand.vmem [shape: f32[4,16,8], index: 0, kind: input, shape index: {}]
  %s1 = inlined_call_operand.vmem [shape: f32[4,16,8], index: 1, kind: output, shape index: {0}]
  %s2 = inlined_call_operand.hbm [shape: f32[4,2,8], index: 2, kind: output, shape index: {1}]
  %3 = xla_tuple %s1, %s2
  %s4 = sld [smem:[#allocation0]]
  $region22: #{tpu_custom_call.1} parent=0
    _
  %s6 = ssub.s32 1, %s4
  %s7 = scalar_select 0, %s6, %s4
  $region1: #{tpu_custom_call.1} parent=0
    #allocation2 [shape = 'u8[4096]{0}', space=vmem, size = 0x1000, scoped, tag = 'output window, operand 1, single buffered']
    #allocation3 [shape = 's32[1]{0}', space=sflag, size = 0x4, scoped, tag = 'scoped memory for tpu_custom_call.1']
    %8 = vsyncpa [#allocation3], 0
    // Predicated region
    $region2: #{tpu_custom_call.1} parent=1 // pred_check
      _
    $region3: #{tpu_custom_call.1} parent=1 // pred_check_branch
      %10 = sbr.rel (0) target = $region5
    $region4: #{tpu_custom_call.1} parent=1 // pred_region
      _
    $region5: #{tpu_custom_call.1} parent=1 // pred_fallthru
      _
    %v11 = vld [vmem:[%s0] sm:$0xff]
    %v12 = vld [vmem:[%s0 + $0x8] sm:$0xff]
    %v13 = vld [vmem:[%s0 + $0x10] sm:$0xff]
    %v14 = vld [vmem:[%s0 + $0x18] sm:$0xff]
    %v15 = vld [vmem:[%s0 + $0x20] sm:$0xff]
    %v16 = vld [vmem:[%s0 + $0x28] sm:$0xff]
    %v17 = vld [vmem:[%s0 + $0x30] sm:$0xff]
    %v18 = vld [vmem:[%s0 + $0x38] sm:$0xff]
    %vm19 = vcmask 64512
    %v20 = vsel %vm19, %v11, 0.0
    %v21 = vsel %vm19, %v12, 0.0
    %v22 = vadd.f32 %v20, %v21
    %v23 = vrot.slane %v22, 4
    %v24 = vadd.f32 %v22, %v23
    %v25 = vrot.slane %v24, 2
    %v26 = vadd.f32 %v24, %v25
    %v27 = vrot.slane %v26, 1
    %v28 = vadd.f32 %v26, %v27
    %v29 = vsel %vm19, %v13, 0.0
    %v30 = vsel %vm19, %v14, 0.0
    %v31 = vadd.f32 %v29, %v30
    %v32 = vrot.slane %v31, 4
    %v33 = vadd.f32 %v31, %v32
    %v34 = vrot.slane %v33, 2
    %v35 = vadd.f32 %v33, %v34
    %v36 = vrot.slane %v35, 1
    %v37 = vadd.f32 %v35, %v36
    %v38 = vsel %vm19, %v15, 0.0
    %v39 = vsel %vm19, %v16, 0.0
    %v40 = vadd.f32 %v38, %v39
    %v41 = vrot.slane %v40, 4
    %v42 = vadd.f32 %v40, %v41
    %v43 = vrot.slane %v42, 2
    %v44 = vadd.f32 %v42, %v43
    %v45 = vrot.slane %v44, 1
    %v46 = vadd.f32 %v44, %v45
    %v47 = vsel %vm19, %v17, 0.0
    %v48 = vsel %vm19, %v18, 0.0
    %v49 = vadd.f32 %v47, %v48
    %v50 = vrot.slane %v49, 4
    %v51 = vadd.f32 %v49, %v50
    %v52 = vrot.slane %v51, 2
    %v53 = vadd.f32 %v51, %v52
    %v54 = vrot.slane %v53, 1
    %v55 = vadd.f32 %v53, %v54
    %v56 = vrcp.pop 16.0
    %v57 = vmul.f32 %v28, %v56
    %v58 = vmul.f32 %v37, %v56
    %v59 = vmul.f32 %v46, %v56
    %v60 = vmul.f32 %v55, %v56
    %v61 = vsub.f32 %v11, %v57
    %v62 = vsub.f32 %v12, %v57
    %v63 = vsub.f32 %v13, %v58
    %v64 = vsub.f32 %v14, %v58
    %v65 = vsub.f32 %v15, %v59
    %v66 = vsub.f32 %v16, %v59
    %v67 = vsub.f32 %v17, %v60
    %v68 = vsub.f32 %v18, %v60
    %v69 = vmul.f32 %v61, %v61
    %v70 = vmul.f32 %v62, %v62
    %v71 = vmul.f32 %v63, %v63
    %v72 = vmul.f32 %v64, %v64
    %v73 = vmul.f32 %v65, %v65
    %v74 = vmul.f32 %v66, %v66
    %v75 = vmul.f32 %v67, %v67
    %v76 = vmul.f32 %v68, %v68
    %v77 = vsel %vm19, %v69, 0.0
    %v78 = vsel %vm19, %v70, 0.0
    %v79 = vadd.f32 %v77, %v78
    %v80 = vrot.slane %v79, 4
    %v81 = vadd.f32 %v79, %v80
    %v82 = vrot.slane %v81, 2
    %v83 = vadd.f32 %v81, %v82
    %v84 = vrot.slane %v83, 1
    %v85 = vadd.f32 %v83, %v84
    %v86 = vsel %vm19, %v71, 0.0
    %v87 = vsel %vm19, %v72, 0.0
    %v88 = vadd.f32 %v86, %v87
    %v89 = vrot.slane %v88, 4
    %v90 = vadd.f32 %v88, %v89
    %v91 = vrot.slane %v90, 2
    %v92 = vadd.f32 %v90, %v91
    %v93 = vrot.slane %v92, 1
    %v94 = vadd.f32 %v92, %v93
    %v95 = vsel %vm19, %v73, 0.0
    %v96 = vsel %vm19, %v74, 0.0
    %v97 = vadd.f32 %v95, %v96
    %v98 = vrot.slane %v97, 4
    %v99 = vadd.f32 %v97, %v98
    %v100 = vrot.slane %v99, 2
    %v101 = vadd.f32 %v99, %v100
    %v102 = vrot.slane %v101, 1
    %v103 = vadd.f32 %v101, %v102
    %v104 = vsel %vm19, %v75, 0.0
    %v105 = vsel %vm19, %v76, 0.0
    %v106 = vadd.f32 %v104, %v105
    %v107 = vrot.slane %v106, 4
    %v108 = vadd.f32 %v106, %v107
    %v109 = vrot.slane %v108, 2
    %v110 = vadd.f32 %v108, %v109
    %v111 = vrot.slane %v110, 1
    %v112 = vadd.f32 %v110, %v111
    %v113 = vmul.f32 %v85, %v56
    %v114 = vmul.f32 %v94, %v56
    %v115 = vmul.f32 %v103, %v56
    %v116 = vmul.f32 %v112, %v56
    %v117 = vadd.f32 %v113, 1e-05
    %v118 = vadd.f32 %v114, 1e-05
    %v119 = vadd.f32 %v115, 1e-05
    %v120 = vadd.f32 %v116, 1e-05
    %v121 = vrsqrt.pop %v117
    %v122 = vmul.f32 %v117, %v121
    %vm123 = vcmp.eq.f32.partialorder %v117, inf
    %v124 = vsel %vm123, %v117, %v122
    %vm125 = vcmp.eq.f32.partialorder %v117, 0.0
    %v126 = vand.u32 %v117, 2147483648
    %v127 = vsel %vm125, %v126, %v124
    %v128 = vrsqrt.pop %v118
    %v129 = vmul.f32 %v118, %v128
    %vm130 = vcmp.eq.f32.partialorder %v118, inf
    %v131 = vsel %vm130, %v118, %v129
    %vm132 = vcmp.eq.f32.partialorder %v118, 0.0
    %v133 = vand.u32 %v118, 2147483648
    %v134 = vsel %vm132, %v133, %v131
    %v135 = vrsqrt.pop %v119
    %v136 = vmul.f32 %v119, %v135
    %vm137 = vcmp.eq.f32.partialorder %v119, inf
    %v138 = vsel %vm137, %v119, %v136
    %vm139 = vcmp.eq.f32.partialorder %v119, 0.0
    %v140 = vand.u32 %v119, 2147483648
    %v141 = vsel %vm139, %v140, %v138
    %v142 = vrsqrt.pop %v120
    %v143 = vmul.f32 %v120, %v142
    %vm144 = vcmp.eq.f32.partialorder %v120, inf
    %v145 = vsel %vm144, %v120, %v143
    %vm146 = vcmp.eq.f32.partialorder %v120, 0.0
    %v147 = vand.u32 %v120, 2147483648
    %v148 = vsel %vm146, %v147, %v145
    %v149 = vrcp.pop %v127
    %v150 = vmul.f32 1.0, %v149
    %v151 = vrcp.pop %v134
    %v152 = vmul.f32 1.0, %v151
    %v153 = vrcp.pop %v141
    %v154 = vmul.f32 1.0, %v153
    %v155 = vrcp.pop %v148
    %v156 = vmul.f32 1.0, %v155
    %v157 = vmul.f32 %v61, %v150
    %v158 = vmul.f32 %v62, %v150
    %v159 = vmul.f32 %v63, %v152
    %v160 = vmul.f32 %v64, %v152
    %v161 = vmul.f32 %v65, %v154
    %v162 = vmul.f32 %v66, %v154
    %v163 = vmul.f32 %v67, %v156
    %v164 = vmul.f32 %v68, %v156
    %165 = vst.msk [vmem:[%s1] sm:$0xff] %vm19, %v157
    %166 = vst.msk [vmem:[%s1 + $0x8] sm:$0xff] %vm19, %v158
    %167 = vst.msk [vmem:[%s1 + $0x10] sm:$0xff] %vm19, %v159
    %168 = vst.msk [vmem:[%s1 + $0x18] sm:$0xff] %vm19, %v160
    %169 = vst.msk [vmem:[%s1 + $0x20] sm:$0xff] %vm19, %v161
    %170 = vst.msk [vmem:[%s1 + $0x28] sm:$0xff] %vm19, %v162
    %171 = vst.msk [vmem:[%s1 + $0x30] sm:$0xff] %vm19, %v163
    %172 = vst.msk [vmem:[%s1 + $0x38] sm:$0xff] %vm19, %v164
    %vm173 = vcmask 57344
    %174 = vst.msk [vmem:[#allocation2] sm:$0x1] %vm173, %v57
    %175 = vst.msk [vmem:[#allocation2 + $0x2] sm:$0x1] %vm173, %v58
    %176 = vst.msk [vmem:[#allocation2 + $0x4] sm:$0x1] %vm173, %v59
    %177 = vst.msk [vmem:[#allocation2 + $0x6] sm:$0x1] %vm173, %v60
    %178 = vst.msk [vmem:[#allocation2 + $0x1] sm:$0x1] %vm173, %v127
    %179 = vst.msk [vmem:[#allocation2 + $0x3] sm:$0x1] %vm173, %v134
    %180 = vst.msk [vmem:[#allocation2 + $0x5] sm:$0x1] %vm173, %v141
    %181 = vst.msk [vmem:[#allocation2 + $0x7] sm:$0x1] %vm173, %v148
    // Predicated region
    $region6: #{tpu_custom_call.1} parent=1 // pred_check
      _
    $region7: #{tpu_custom_call.1} parent=1 // pred_check_branch
      %183 = sbr.rel (0) target = $region9
    $region8: #{tpu_custom_call.1} parent=1 // pred_region
      _
    $region9: #{tpu_custom_call.1} parent=1 // pred_fallthru
      _
    // Predicated region
    $region10: #{tpu_custom_call.1} parent=1 // pred_check
      _
    $region11: #{tpu_custom_call.1} parent=1 // pred_check_branch
      %185 = sbr.rel (0) target = $region13
    $region12: #{tpu_custom_call.1} parent=1 // pred_region
      %s187 = ssub.s32 128, 128
      %188 = vsyncadd [#allocation3], %s187
      %s189 = sshll.u32 [#allocation2], 4
      %s190 = int_to_ptr.vmem [resolvable:$true] %s189
      %195 = dma.vmem_to_hbm [thread:$0]  %s190, 128, %s2, [#allocation3], 32, 32, 2
    $region13: #{tpu_custom_call.1} parent=1 // pred_fallthru
      _
    // Predicated region
    $region14: #{tpu_custom_call.1} parent=1 // pred_check
      _
    $region15: #{tpu_custom_call.1} parent=1 // pred_check_branch
      %197 = sbr.rel (0) target = $region17
    $region16: #{tpu_custom_call.1} parent=1 // pred_region
      _
    $region17: #{tpu_custom_call.1} parent=1 // pred_fallthru
      _
    // Predicated region
    $region18: #{tpu_custom_call.1} parent=1 // pred_check
      _
    $region19: #{tpu_custom_call.1} parent=1 // pred_check_branch
      %199 = sbr.rel (0) target = $region21
    $region20: #{tpu_custom_call.1} parent=1 // pred_region
      %200 = dma.done [#allocation3], 128
    $region21: #{tpu_custom_call.1} parent=1 // pred_fallthru
      _
    %201 = vsyncpa [#allocation3], 1

</llo_original>
